<compile_context>
chip_gen: v7x
topology: tpu7x:2x2x1
jax: 0.10.0
libtpu: 0.0.40
codegen_flags: <defaults>
</compile_context>

<pallas_src>
import functools

import jax
import jax.numpy as jnp
from jax.experimental import pallas as pl
from jax.experimental.pallas import tpu as pltpu

EPS = 1e-5      # CLIP LayerNorm eps
_ALIGN = 16     # pad the in-kernel sequence length to a bf16 sublane tile


def _round_up(x, m):
    return (x + m - 1) // m * m


def _layernorm(x, g, b):
    # x, g, b float32; statistics in float32.
    mu = jnp.mean(x, axis=-1, keepdims=True)
    xc = x - mu
    var = jnp.mean(xc * xc, axis=-1, keepdims=True)
    return xc * jax.lax.rsqrt(var + EPS) * g + b


# ---------------------------------------------------------------------------
# Kernel A: patch-embedding matmul (== conv1, kernel=stride=patch, no bias)
# fused with CLS concat + positional embedding + ln_pre.  Output is already
# padded to S_pad rows (pad rows zero) so the transformer kernel can do one
# aligned full-tile scratch init.
# ---------------------------------------------------------------------------
def _embed_prep_kernel(p_ref, w_ref, cls_ref, pos_ref, g_ref, b_ref, o_ref, *,
                       s_pad):
    P = p_ref.shape[1]
    D = w_ref.shape[1]
    emb = jnp.dot(p_ref[0], w_ref[...],
                  preferred_element_type=jnp.float32)               # (P, D) f32
    pos = pos_ref[...]                                              # (P+1, D)
    rows = jnp.concatenate([cls_ref[...] + pos[0:1, :],
                            emb + pos[1:, :]], axis=0)              # (P+1, D)
    rows = _layernorm(rows, g_ref[...], b_ref[...])
    n_pad = s_pad - (P + 1)
    if n_pad > 0:   # pad rows are overwritten by ctx in the transformer kernel
        rows = jnp.concatenate([rows, jnp.zeros((n_pad, D), rows.dtype)], axis=0)
    o_ref[0] = rows.astype(o_ref.dtype)


def embed_prep(patches, w_conv, cls_emb, pos_emb, g, b, *, s_pad):
    B, P, K = patches.shape
    D = w_conv.shape[1]
    kern = functools.partial(_embed_prep_kernel, s_pad=s_pad)
    return pl.pallas_call(
        kern,
        out_shape=jax.ShapeDtypeStruct((B, s_pad, D), jnp.bfloat16),
        grid=(B,),
        in_specs=[
            pl.BlockSpec((1, P, K), lambda i: (i, 0, 0)),
            pl.BlockSpec((K, D), lambda i: (0, 0)),
            pl.BlockSpec((1, D), lambda i: (0, 0)),
            pl.BlockSpec((P + 1, D), lambda i: (0, 0)),
            pl.BlockSpec((1, D), lambda i: (0, 0)),
            pl.BlockSpec((1, D), lambda i: (0, 0)),
        ],
        out_specs=pl.BlockSpec((1, s_pad, D), lambda i: (i, 0, 0)),
        compiler_params=pltpu.CompilerParams(
            dimension_semantics=("parallel",),
            vmem_limit_bytes=32 * 1024 * 1024),
    )(patches, w_conv, cls_emb, pos_emb, g, b)


# ---------------------------------------------------------------------------
# Kernel B: the whole VPT-Deep transformer + fused ln_post/proj head.
# grid=(B, L); per-layer weights are blocked along L (double-buffered DMA ->
# next layer's weights prefetch under current layer's compute); the residual
# stream is a VMEM scratch carried across L.
# ---------------------------------------------------------------------------
def _vptd_block_kernel(x_ref, ctx_ref,
                       ln1g_ref, ln1b_ref, wqkv_ref, bqkv_ref, wo_ref, bo_ref,
                       ln2g_ref, ln2b_ref, wfc_ref, bfc_ref, wpr_ref, bpr_ref,
                       lnpg_ref, lnpb_ref, proj_ref,
                       o_ref, xs_ref, *, num_heads, s0, s_valid):
    l = pl.program_id(1)
    S_pad, D = xs_ref.shape
    hd = D // num_heads
    scale = hd ** -0.5

    @pl.when(l == 0)
    def _():
        xs_ref[...] = x_ref[0].astype(jnp.float32)   # aligned full-tile init

    # VPT-Deep: drop the previous layer's prompt rows, append this layer's
    # (a single overwrite of rows [s0, S_pad); zero pad rows stay zero).
    xs_ref[pl.ds(s0, S_pad - s0), :] = ctx_ref[0].astype(jnp.float32)

    x = xs_ref[...]                                              # (S_pad, D) f32

    # --- attention branch (pre-LN) ---
    h = _layernorm(x, ln1g_ref[0], ln1b_ref[0]).astype(jnp.bfloat16)
    qkv = jnp.dot(h, wqkv_ref[0],
                  preferred_element_type=jnp.float32) + bqkv_ref[0]   # (S, 3D) f32

    def split_heads(m):  # (S_pad, D) f32 -> (H, S_pad, hd) bf16
        return jnp.transpose(m.reshape(S_pad, num_heads, hd),
                             (1, 0, 2)).astype(jnp.bfloat16)

    # 1/sqrt(hd) folded into q (f32, before the (H,S,S) logits exist).
    q = split_heads(qkv[:, 0 * D:1 * D] * scale)
    k = split_heads(qkv[:, 1 * D:2 * D])
    v = split_heads(qkv[:, 2 * D:3 * D])
    # TODO(synk): the transpose-free 'qhd,khd->hqk' form needs non-leading batch
    # dims in Mosaic dot_general; keeping the leading-batch einsum + transpose
    # form that is known to lower cleanly.

    s = jnp.einsum('hqd,hkd->hqk', q, k,
                   preferred_element_type=jnp.float32)               # (H,S,S) f32
    if S_pad > s_valid:   # mask padded key columns (prompt rows ARE valid keys)
        kidx = jax.lax.broadcasted_iota(jnp.int32, (1, 1, S_pad), 2)
        s = jnp.where(kidx < s_valid, s, -1e30)
    s = s - jnp.max(s, axis=-1, keepdims=True)
    e = jnp.exp(s)
    p = e * pl.reciprocal(jnp.sum(e, axis=-1, keepdims=True), approx=True)
    o_h = jnp.einsum('hqk,hkd->hqd', p.astype(jnp.bfloat16), v,
                     preferred_element_type=jnp.float32)              # (H,S,hd)
    attn_ctx = jnp.transpose(o_h, (1, 0, 2)).reshape(S_pad, D)
    x = x + jnp.dot(attn_ctx.astype(jnp.bfloat16), wo_ref[0],
                    preferred_element_type=jnp.float32) + bo_ref[0]

    # --- MLP branch (QuickGELU, as in CLIP) ---
    h2 = _layernorm(x, ln2g_ref[0], ln2b_ref[0]).astype(jnp.bfloat16)
    f = jnp.dot(h2, wfc_ref[0],
                preferred_element_type=jnp.float32) + bfc_ref[0]
    f = f * jax.nn.sigmoid(1.702 * f)
    y = x + jnp.dot(f.astype(jnp.bfloat16), wpr_ref[0],
                    preferred_element_type=jnp.float32) + bpr_ref[0]

    xs_ref[...] = y   # carry to next layer (prompt/pad rows overwritten there)

    # --- fused head on the last layer: ln_post(CLS) @ proj ---
    @pl.when(l == pl.num_programs(1) - 1)
    def _():
        cls = _layernorm(y[0:1, :], lnpg_ref[...], lnpb_ref[...])
        o_ref[0] = jnp.dot(cls.astype(jnp.bfloat16), proj_ref[...],
                           preferred_element_type=jnp.float32)


def vptd_transformer(x_prep, ctx_pad, blk, ln_post_g, ln_post_b, proj, *,
                     num_heads, s0, s_valid):
    B, S_pad, D = x_prep.shape
    L = ctx_pad.shape[0]
    out_dim = proj.shape[1]

    def per_layer(arr):   # stacked (L, a, b) -> block (1, a, b), varies with l
        return pl.BlockSpec((1,) + arr.shape[1:], lambda bi, li: (li, 0, 0))

    def const2d(arr):     # fetched once, resident
        return pl.BlockSpec(arr.shape, lambda bi, li: (0, 0))

    kern = functools.partial(_vptd_block_kernel, num_heads=num_heads,
                             s0=s0, s_valid=s_valid)
    out = pl.pallas_call(
        kern,
        out_shape=jax.ShapeDtypeStruct((B, 1, out_dim), jnp.float32),
        grid=(B, L),
        in_specs=[
            pl.BlockSpec((1, S_pad, D), lambda bi, li: (bi, 0, 0)),  # per image
            per_layer(ctx_pad),
            per_layer(blk["ln1_g"]), per_layer(blk["ln1_b"]),
            per_layer(blk["w_qkv"]), per_layer(blk["b_qkv"]),
            per_layer(blk["w_out"]), per_layer(blk["b_out"]),
            per_layer(blk["ln2_g"]), per_layer(blk["ln2_b"]),
            per_layer(blk["w_fc"]), per_layer(blk["b_fc"]),
            per_layer(blk["w_proj"]), per_layer(blk["b_proj"]),
            const2d(ln_post_g), const2d(ln_post_b), const2d(proj),
        ],
        out_specs=pl.BlockSpec((1, 1, out_dim), lambda bi, li: (bi, 0, 0)),
        scratch_shapes=[pltpu.VMEM((S_pad, D), jnp.float32)],   # residual carry
        compiler_params=pltpu.CompilerParams(
            dimension_semantics=("parallel", "arbitrary"),
            vmem_limit_bytes=48 * 1024 * 1024),
    )(x_prep, ctx_pad,
      blk["ln1_g"], blk["ln1_b"], blk["w_qkv"], blk["b_qkv"],
      blk["w_out"], blk["b_out"], blk["ln2_g"], blk["ln2_b"],
      blk["w_fc"], blk["b_fc"], blk["w_proj"], blk["b_proj"],
      ln_post_g, ln_post_b, proj)
    return out.reshape(B, out_dim)


# ---------------------------------------------------------------------------
# Full forward pass (XLA glue + the two kernels)
# ---------------------------------------------------------------------------
def image_encoder_vptd(x_nchw, params):
    B, C, Himg, Wimg = x_nchw.shape
    p = params["patch_size"]
    D = params["width"]
    gh, gw = Himg // p, Wimg // p
    P = gh * gw
    S0 = P + 1
    n_ctx = params["n_ctx"]
    L = params["layers"]
    s_valid = S0 + n_ctx
    S_pad = _round_up(s_valid, _ALIGN)

    # conv1 == non-overlapping patch extraction + matmul (flatten order c,kh,kw)
    patches = (x_nchw.reshape(B, C, gh, p, gw, p)
               .transpose(0, 2, 4, 1, 3, 5)
               .reshape(B, P, C * p * p)).astype(jnp.bfloat16)
    w_conv = params["conv1_w"].reshape(D, C * p * p).T          # (C*p*p, D) bf16

    # patch embed + class token + positional embedding + ln_pre (one kernel)
    x = embed_prep(patches, w_conv, params["class_embedding"],
                   params["positional_embedding"],
                   params["ln_pre_g"], params["ln_pre_b"],
                   s_pad=S_pad)                                  # (B, S_pad, D)

    # pad per-layer ctx with zero rows up to the aligned prompt slot width
    ctx = params["ctx"]
    n_ctx_pad = S_pad - S0
    if n_ctx_pad > n_ctx:
        ctx = jnp.concatenate(
            [ctx, jnp.zeros((L, n_ctx_pad - n_ctx, D), ctx.dtype)], axis=1)

    # VPT-Deep transformer + ln_post(CLS) @ proj, all in one pallas_call.
    # (The per-layer attention maps returned by the PyTorch block are discarded
    #  upstream and therefore never computed.)
    return vptd_transformer(x, ctx, params["blocks"],
                            params["ln_post_g"], params["ln_post_b"],
                            params["proj"],
                            num_heads=params["heads"], s0=S0, s_valid=s_valid)


# ---------------------------------------------------------------------------
# Deterministic parameter construction (weights bf16, LN/bias/pos f32),
# per-layer tensors pre-stacked along a leading L axis.
# ---------------------------------------------------------------------------
def make_params(key, *, width, patch_size, in_ch, layers, heads, n_ctx,
                seq_len, out_dim):
    keys = iter(jax.random.split(key, 16))

    def nrm(shp, s, dtype=jnp.bfloat16):
        return (s * jax.random.normal(next(keys), shp)).astype(dtype)

    blocks = dict(
        ln1_g=jnp.ones((layers, 1, width), jnp.float32),
        ln1_b=jnp.zeros((layers, 1, width), jnp.float32),
        w_qkv=nrm((layers, width, 3 * width), width ** -0.5),
        b_qkv=jnp.zeros((layers, 1, 3 * width), jnp.float32),
        w_out=nrm((layers, width, width), width ** -0.5),
        b_out=jnp.zeros((layers, 1, width), jnp.float32),
        ln2_g=jnp.ones((layers, 1, width), jnp.float32),
        ln2_b=jnp.zeros((layers, 1, width), jnp.float32),
        w_fc=nrm((layers, width, 4 * width), width ** -0.5),
        b_fc=jnp.zeros((layers, 1, 4 * width), jnp.float32),
        w_proj=nrm((layers, 4 * width, width), (4 * width) ** -0.5),
        b_proj=jnp.zeros((layers, 1, width), jnp.float32),
    )

    return dict(
        width=width, patch_size=patch_size, layers=layers, heads=heads,
        n_ctx=n_ctx,
        conv1_w=nrm((width, in_ch, patch_size, patch_size), 0.02),
        class_embedding=nrm((1, width), width ** -0.5, jnp.float32),
        positional_embedding=nrm((seq_len, width), width ** -0.5, jnp.float32),
        ln_pre_g=jnp.ones((1, width), jnp.float32),
        ln_pre_b=jnp.zeros((1, width), jnp.float32),
        ctx=nrm((layers, n_ctx, width), 0.02),          # VPTDeepPromptLearner.ctx
        blocks=blocks,
        ln_post_g=jnp.ones((1, width), jnp.float32),
        ln_post_b=jnp.zeros((1, width), jnp.float32),
        proj=nrm((width, out_dim), width ** -0.5),      # ProjLearner.proj
    )


if __name__ == "__main__":
    # Small, module-consistent shapes: B=2, 3x16x16 image, patch=4 -> 16
    # patches (+1 CLS), width=32, 4 heads, 3 layers, n_ctx=2, out_dim=16.
    B, C, IMG, PATCH = 2, 3, 16, 4
    WIDTH, HEADS, LAYERS, N_CTX, OUT = 32, 4, 3, 2, 16
    P = (IMG // PATCH) ** 2

    key = jax.random.PRNGKey(0)
    k_x, k_p = jax.random.split(key)
    x = jax.random.normal(k_x, (B, C, IMG, IMG), dtype=jnp.float32)
    params = make_params(k_p, width=WIDTH, patch_size=PATCH, in_ch=C,
                         layers=LAYERS, heads=HEADS, n_ctx=N_CTX,
                         seq_len=P + 1, out_dim=OUT)

    out = image_encoder_vptd(x, params)
    out = jax.block_until_ready(out)
    assert out.shape == (B, OUT) and out.dtype == jnp.float32
    print("KERNEL_OK")
</pallas_src>

<mosaic_0001>
module attributes {stable_mosaic.version = 11 : i64} {
  func.func @_embed_prep_kernel(%arg0: i32, %arg1: memref<1x16x48xbf16, #tpu.memory_space<vmem>>, %arg2: memref<48x32xbf16, #tpu.memory_space<vmem>>, %arg3: memref<1x32xf32, #tpu.memory_space<vmem>>, %arg4: memref<17x32xf32, #tpu.memory_space<vmem>>, %arg5: memref<1x32xf32, #tpu.memory_space<vmem>>, %arg6: memref<1x32xf32, #tpu.memory_space<vmem>>, %arg7: memref<1x32x32xbf16, #tpu.memory_space<vmem>>) attributes {dimension_semantics = [#tpu.dimension_semantics<parallel>], iteration_bounds = array<i64: 2>, scalar_prefetch = 0 : i64, scratch_operands = 0 : i64, tpu.core_type = #tpu.core_type<tc>, window_params = [{transform_indices = @transform_0, window_bounds = array<i64: 1, 16, 48>}, {pipeline_mode = #tpu.pipeline_mode<synchronous>, transform_indices = @transform_1, window_bounds = array<i64: 48, 32>}, {pipeline_mode = #tpu.pipeline_mode<synchronous>, transform_indices = @transform_2, window_bounds = array<i64: 1, 32>}, {pipeline_mode = #tpu.pipeline_mode<synchronous>, transform_indices = @transform_3, window_bounds = array<i64: 17, 32>}, {pipeline_mode = #tpu.pipeline_mode<synchronous>, transform_indices = @transform_4, window_bounds = array<i64: 1, 32>}, {pipeline_mode = #tpu.pipeline_mode<synchronous>, transform_indices = @transform_5, window_bounds = array<i64: 1, 32>}, {transform_indices = @transform_6, window_bounds = array<i64: 1, 32, 32>}]} {
    %c0 = arith.constant 0 : index
    %c0_0 = arith.constant 0 : index
    %c0_1 = arith.constant 0 : index
    %0 = vector.load %arg1[%c0, %c0_0, %c0_1] : memref<1x16x48xbf16, #tpu.memory_space<vmem>>, vector<1x16x48xbf16>
    %1 = vector.shape_cast %0 : vector<1x16x48xbf16> to vector<16x48xbf16>
    %c0_2 = arith.constant 0 : index
    %c0_3 = arith.constant 0 : index
    %2 = vector.load %arg2[%c0_2, %c0_3] : memref<48x32xbf16, #tpu.memory_space<vmem>>, vector<48x32xbf16>
    %cst = arith.constant dense<0.000000e+00> : vector<16x32xf32>
    %3 = tpu.matmul %1, %2, %cst {dimension_numbers = #tpu.dot_dimension_numbers<[1], [0], [0], [1], [0, 0, 1, 1], [], []>} : vector<16x48xbf16>, vector<48x32xbf16>, vector<16x32xf32> -> vector<16x32xf32>
    %c0_4 = arith.constant 0 : index
    %c0_5 = arith.constant 0 : index
    %4 = vector.load %arg4[%c0_4, %c0_5] : memref<17x32xf32, #tpu.memory_space<vmem>>, vector<17x32xf32>
    %c0_6 = arith.constant 0 : index
    %c0_7 = arith.constant 0 : index
    %5 = vector.load %arg3[%c0_6, %c0_7] : memref<1x32xf32, #tpu.memory_space<vmem>>, vector<1x32xf32>
    %6 = vector.extract_strided_slice %4 {offsets = [0, 0], sizes = [1, 32], strides = [1, 1]} : vector<17x32xf32> to vector<1x32xf32>
    %7 = arith.addf %5, %6 : vector<1x32xf32>
    %8 = vector.extract_strided_slice %4 {offsets = [1, 0], sizes = [16, 32], strides = [1, 1]} : vector<17x32xf32> to vector<16x32xf32>
    %9 = arith.addf %3, %8 : vector<16x32xf32>
    %10 = tpu.concatenate %7, %9 in 0 : vector<1x32xf32>, vector<16x32xf32> -> vector<17x32xf32>
    %c0_8 = arith.constant 0 : index
    %c0_9 = arith.constant 0 : index
    %11 = vector.load %arg5[%c0_8, %c0_9] : memref<1x32xf32, #tpu.memory_space<vmem>>, vector<1x32xf32>
    %c0_10 = arith.constant 0 : index
    %c0_11 = arith.constant 0 : index
    %12 = vector.load %arg6[%c0_10, %c0_11] : memref<1x32xf32, #tpu.memory_space<vmem>>, vector<1x32xf32>
    %cst_12 = arith.constant dense<0.000000e+00> : vector<17xf32>
    %13 = vector.multi_reduction <add>, %10, %cst_12 [1] : vector<17x32xf32> to vector<17xf32>
    %14 = vector.shape_cast %13 : vector<17xf32> to vector<17x1xf32>
    %cst_13 = arith.constant 3.200000e+01 : f32
    %15 = vector.broadcast %cst_13 : f32 to vector<17x1xf32>
    %16 = arith.divf %14, %15 : vector<17x1xf32>
    %17 = vector.broadcast %16 : vector<17x1xf32> to vector<17x32xf32>
    %18 = arith.subf %10, %17 : vector<17x32xf32>
    %19 = arith.mulf %18, %18 : vector<17x32xf32>
    %cst_14 = arith.constant dense<0.000000e+00> : vector<17xf32>
    %20 = vector.multi_reduction <add>, %19, %cst_14 [1] : vector<17x32xf32> to vector<17xf32>
    %21 = vector.shape_cast %20 : vector<17xf32> to vector<17x1xf32>
    %cst_15 = arith.constant 3.200000e+01 : f32
    %22 = vector.broadcast %cst_15 : f32 to vector<17x1xf32>
    %23 = arith.divf %21, %22 : vector<17x1xf32>
    %cst_16 = arith.constant 9.99999974E-6 : f32
    %24 = vector.broadcast %cst_16 : f32 to vector<17x1xf32>
    %25 = arith.addf %23, %24 : vector<17x1xf32>
    %26 = math.rsqrt %25 : vector<17x1xf32>
    %27 = vector.broadcast %26 : vector<17x1xf32> to vector<17x32xf32>
    %28 = arith.mulf %18, %27 : vector<17x32xf32>
    %29 = vector.broadcast %11 : vector<1x32xf32> to vector<17x32xf32>
    %30 = arith.mulf %28, %29 : vector<17x32xf32>
    %31 = vector.broadcast %12 : vector<1x32xf32> to vector<17x32xf32>
    %32 = arith.addf %30, %31 : vector<17x32xf32>
    %cst_17 = arith.constant 0.000000e+00 : f32
    %33 = vector.broadcast %cst_17 : f32 to vector<15x32xf32>
    %34 = tpu.concatenate %32, %33 in 0 : vector<17x32xf32>, vector<15x32xf32> -> vector<32x32xf32>
    %35 = arith.truncf %34 : vector<32x32xf32> to vector<32x32xbf16>
    %c0_18 = arith.constant 0 : index
    %c0_19 = arith.constant 0 : index
    %c0_20 = arith.constant 0 : index
    %36 = vector.load %arg7[%c0_18, %c0_19, %c0_20] : memref<1x32x32xbf16, #tpu.memory_space<vmem>>, vector<1x32x32xbf16>
    %37 = vector.shape_cast %36 : vector<1x32x32xbf16> to vector<32x32xbf16>
    %38 = vector.shape_cast %35 : vector<32x32xbf16> to vector<1x32x32xbf16>
    tpu.vector_store %arg7[%c0_18, %c0_19, %c0_20], %38 {strides = array<i32>} : memref<1x32x32xbf16, #tpu.memory_space<vmem>>, vector<1x32x32xbf16>,
    return
  }
  func.func @transform_0(%arg0: i32) -> (i32, i32, i32) {
    %c0_i32 = arith.constant 0 : i32
    %c0_i32_0 = arith.constant 0 : i32
    %c0_i32_1 = arith.constant 0 : i32
    return %arg0, %c0_i32, %c0_i32_0 : i32, i32, i32
  }
  func.func @transform_1(%arg0: i32) -> (i32, i32) {
    %c0_i32 = arith.constant 0 : i32
    %c0_i32_0 = arith.constant 0 : i32
    %c0_i32_1 = arith.constant 0 : i32
    return %c0_i32, %c0_i32_0 : i32, i32
  }
  func.func @transform_2(%arg0: i32) -> (i32, i32) {
    %c0_i32 = arith.constant 0 : i32
    %c0_i32_0 = arith.constant 0 : i32
    %c0_i32_1 = arith.constant 0 : i32
    return %c0_i32, %c0_i32_0 : i32, i32
  }
  func.func @transform_3(%arg0: i32) -> (i32, i32) {
    %c0_i32 = arith.constant 0 : i32
    %c0_i32_0 = arith.constant 0 : i32
    %c0_i32_1 = arith.constant 0 : i32
    return %c0_i32, %c0_i32_0 : i32, i32
  }
  func.func @transform_4(%arg0: i32) -> (i32, i32) {
    %c0_i32 = arith.constant 0 : i32
    %c0_i32_0 = arith.constant 0 : i32
    %c0_i32_1 = arith.constant 0 : i32
    return %c0_i32, %c0_i32_0 : i32, i32
  }
  func.func @transform_5(%arg0: i32) -> (i32, i32) {
    %c0_i32 = arith.constant 0 : i32
    %c0_i32_0 = arith.constant 0 : i32
    %c0_i32_1 = arith.constant 0 : i32
    return %c0_i32, %c0_i32_0 : i32, i32
  }
  func.func @transform_6(%arg0: i32) -> (i32, i32, i32) {
    %c0_i32 = arith.constant 0 : i32
    %c0_i32_0 = arith.constant 0 : i32
    %c0_i32_1 = arith.constant 0 : i32
    return %arg0, %c0_i32, %c0_i32_0 : i32, i32, i32
  }
}

</mosaic_0001>

<llo_original>
// kernel: tpu_custom_call.1
$region0: #{tpu_custom_call.1}
  #allocation0 [shape = 'u32[]', space=smem, size = 0x4, offset = 0x4, fixed_abs, tag = 'smem constant byte address 0x4 - core index']
  #allocation1 [shape = 'u32[144,128]{1,0:T(1,128)}', space=vmem, size = 0x12000, scoped, tag = 'internal scratch']
  %s0 = inlined_call_operand.vmem [shape: bf16[2,16,48], index: 0, kind: input, shape index: {}]
  %s1 = inlined_call_operand.vmem [shape: bf16[48,32], index: 1, kind: input, shape index: {}]
  %s2 = inlined_call_operand.vmem [shape: f32[1,32], index: 2, kind: input, shape index: {}]
  %s3 = inlined_call_operand.vmem [shape: f32[17,32], index: 3, kind: input, shape index: {}]
  %s4 = inlined_call_operand.vmem [shape: f32[1,32], index: 4, kind: input, shape index: {}]
  %s5 = inlined_call_operand.vmem [shape: f32[1,32], index: 5, kind: input, shape index: {}]
  %s6 = inlined_call_operand.hbm [shape: bf16[2,32,32], index: 6, kind: output, shape index: {}]
  %s7 = sld [smem:[#allocation0]]
  $region57: #{tpu_custom_call.1} parent=0
    _
  %s9 = ssub.s32 1, %s7
  %s10 = scalar_select 0, %s9, %s7
  $region1: #{tpu_custom_call.1} parent=0
    #allocation2 [shape = 'u8[16384]{0}', space=vmem, size = 0x4000, scoped, tag = 'output window, operand 0']
    #allocation3 [shape = 's32[2]{0}', space=sflag, size = 0x8, scoped, tag = 'scoped memory for tpu_custom_call.1']
    %11 = vsyncpa [#allocation3], 0
    %s12 = scalar_lea.sflag [#allocation3], 1
    %13 = vsyncpa %s12, 0
    loop: start=0, step=1, limit=4
    $region2: #{tpu_custom_call.1} parent=1 // loop_pre_header
      _
    $region3: #{tpu_custom_call.1} parent=1 // loop_header
      %s15 = sphi 0, %s19
      %p16 = scmp.ge.s32.totalorder %s15, 4
      %s25 = sphi 0, %s27
      %s28 = sphi 0, %s25
      %s29 = sphi 0, %s28
      %s45 = sphi 0, %s29
      %s49 = sphi 0, %s49
      %s51 = sphi 0, %s49
      %s52 = sphi 0, %s51
      %s66 = sphi 0, %s52
      %s70 = sphi 0, %s70
      %s72 = sphi 0, %s70
      %s73 = sphi 0, %s72
      %s87 = sphi 0, %s73
      %s91 = sphi 0, %s91
      %s93 = sphi 0, %s91
      %s94 = sphi 0, %s93
      %s108 = sphi 0, %s94
      %s112 = sphi 0, %s112
      %s114 = sphi 0, %s112
      %s115 = sphi 0, %s114
      %s129 = sphi 0, %s115
      %s133 = sphi 0, %s133
      %s135 = sphi 0, %s133
      %s136 = sphi 0, %s135
      %s150 = sphi 0, %s136
      %s156 = sphi 0, %s158
      %s159 = sphi 0, %s156
      %s160 = sphi 0, %s159
      %s176 = sphi 0, %s160
    $region4: #{tpu_custom_call.1} parent=1 // loop_header_branch
      %18 = sbr.rel (%p16) target = $region8
    $region5: #{tpu_custom_call.1} parent=1 // loop_body
      %s20 = ssub.s32 %s15, 1
      %s21 = ssub.s32 %s15, 2
      %s22 = sadd.s32 %s15, 1
      %s23 = ssub.s32 %s15, %s22
      %p24 = scmp.eq.s32.totalorder %s23, 0
      %s26 = sadd.s32 %s25, 1
      %s27 = scalar_select %p24, %s25, %s26
      %p30 = pneg %p24
      %p31 = scmp.eq.s32.totalorder %s15, 1
      %p32 = por %p30, %p31
      %p33 = scmp.ne.s32.totalorder %s25, %s28
      %p34 = scmp.eq.s32.totalorder %s15, 0
      %p35 = por %p33, %p34
      %p36 = scmp.ne.s32.totalorder %s25, %s28
      %p37 = scmp.eq.s32.totalorder %s20, 1
      %p38 = por %p36, %p37
      %p39 = scmp.ne.s32.totalorder %s28, %s29
      %p40 = scmp.eq.s32.totalorder %s20, 0
      %p41 = por %p39, %p40
      %p42 = scmp.ne.s32.totalorder %s28, %s29
      %p43 = scmp.eq.s32.totalorder %s21, 1
      %p44 = por %p42, %p43
      %p46 = scmp.ne.s32.totalorder %s29, %s45
      %p47 = scmp.eq.s32.totalorder %s21, 0
      %p48 = por %p46, %p47
      %s50 = sadd.s32 %s49, 1
      %p53 = scmp.eq.s32.totalorder %s15, 1
      %p54 = scmp.ne.s32.totalorder %s49, %s51
      %p55 = scmp.eq.s32.totalorder %s15, 0
      %p56 = por %p54, %p55
      %p57 = scmp.ne.s32.totalorder %s49, %s51
      %p58 = scmp.eq.s32.totalorder %s20, 1
      %p59 = por %p57, %p58
      %p60 = scmp.ne.s32.totalorder %s51, %s52
      %p61 = scmp.eq.s32.totalorder %s20, 0
      %p62 = por %p60, %p61
      %p63 = scmp.ne.s32.totalorder %s51, %s52
      %p64 = scmp.eq.s32.totalorder %s21, 1
      %p65 = por %p63, %p64
      %p67 = scmp.ne.s32.totalorder %s52, %s66
      %p68 = scmp.eq.s32.totalorder %s21, 0
      %p69 = por %p67, %p68
      %s71 = sadd.s32 %s70, 1
      %p74 = scmp.eq.s32.totalorder %s15, 1
      %p75 = scmp.ne.s32.totalorder %s70, %s72
      %p76 = scmp.eq.s32.totalorder %s15, 0
      %p77 = por %p75, %p76
      %p78 = scmp.ne.s32.totalorder %s70, %s72
      %p79 = scmp.eq.s32.totalorder %s20, 1
      %p80 = por %p78, %p79
      %p81 = scmp.ne.s32.totalorder %s72, %s73
      %p82 = scmp.eq.s32.totalorder %s20, 0
      %p83 = por %p81, %p82
      %p84 = scmp.ne.s32.totalorder %s72, %s73
      %p85 = scmp.eq.s32.totalorder %s21, 1
      %p86 = por %p84, %p85
      %p88 = scmp.ne.s32.totalorder %s73, %s87
      %p89 = scmp.eq.s32.totalorder %s21, 0
      %p90 = por %p88, %p89
      %s92 = sadd.s32 %s91, 1
      %p95 = scmp.eq.s32.totalorder %s15, 1
      %p96 = scmp.ne.s32.totalorder %s91, %s93
      %p97 = scmp.eq.s32.totalorder %s15, 0
      %p98 = por %p96, %p97
      %p99 = scmp.ne.s32.totalorder %s91, %s93
      %p100 = scmp.eq.s32.totalorder %s20, 1
      %p101 = por %p99, %p100
      %p102 = scmp.ne.s32.totalorder %s93, %s94
      %p103 = scmp.eq.s32.totalorder %s20, 0
      %p104 = por %p102, %p103
      %p105 = scmp.ne.s32.totalorder %s93, %s94
      %p106 = scmp.eq.s32.totalorder %s21, 1
      %p107 = por %p105, %p106
      %p109 = scmp.ne.s32.totalorder %s94, %s108
      %p110 = scmp.eq.s32.totalorder %s21, 0
      %p111 = por %p109, %p110
      %s113 = sadd.s32 %s112, 1
      %p116 = scmp.eq.s32.totalorder %s15, 1
      %p117 = scmp.ne.s32.totalorder %s112, %s114
      %p118 = scmp.eq.s32.totalorder %s15, 0
      %p119 = por %p117, %p118
      %p120 = scmp.ne.s32.totalorder %s112, %s114
      %p121 = scmp.eq.s32.totalorder %s20, 1
      %p122 = por %p120, %p121
      %p123 = scmp.ne.s32.totalorder %s114, %s115
      %p124 = scmp.eq.s32.totalorder %s20, 0
      %p125 = por %p123, %p124
      %p126 = scmp.ne.s32.totalorder %s114, %s115
      %p127 = scmp.eq.s32.totalorder %s21, 1
      %p128 = por %p126, %p127
      %p130 = scmp.ne.s32.totalorder %s115, %s129
      %p131 = scmp.eq.s32.totalorder %s21, 0
      %p132 = por %p130, %p131
      %s134 = sadd.s32 %s133, 1
      %p137 = scmp.eq.s32.totalorder %s15, 1
      %p138 = scmp.ne.s32.totalorder %s133, %s135
      %p139 = scmp.eq.s32.totalorder %s15, 0
      %p140 = por %p138, %p139
      %p141 = scmp.ne.s32.totalorder %s133, %s135
      %p142 = scmp.eq.s32.totalorder %s20, 1
      %p143 = por %p141, %p142
      %p144 = scmp.ne.s32.totalorder %s135, %s136
      %p145 = scmp.eq.s32.totalorder %s20, 0
      %p146 = por %p144, %p145
      %p147 = scmp.ne.s32.totalorder %s135, %s136
      %p148 = scmp.eq.s32.totalorder %s21, 1
      %p149 = por %p147, %p148
      %p151 = scmp.ne.s32.totalorder %s136, %s150
      %p152 = scmp.eq.s32.totalorder %s21, 0
      %p153 = por %p151, %p152
      %s154 = ssub.s32 %s15, %s22
      %p155 = scmp.eq.s32.totalorder %s154, 0
      %s157 = sadd.s32 %s156, 1
      %s158 = scalar_select %p155, %s156, %s157
      %p161 = pneg %p155
      %p162 = scmp.eq.s32.totalorder %s15, 1
      %p163 = por %p161, %p162
      %p164 = scmp.ne.s32.totalorder %s156, %s159
      %p165 = scmp.eq.s32.totalorder %s15, 0
      %p166 = por %p164, %p165
      %p167 = scmp.ne.s32.totalorder %s156, %s159
      %p168 = scmp.eq.s32.totalorder %s20, 1
      %p169 = por %p167, %p168
      %p170 = scmp.ne.s32.totalorder %s159, %s160
      %p171 = scmp.eq.s32.totalorder %s20, 0
      %p172 = por %p170, %p171
      %p173 = scmp.ne.s32.totalorder %s159, %s160
      %p174 = scmp.eq.s32.totalorder %s21, 1
      %p175 = por %p173, %p174
      %p177 = scmp.ne.s32.totalorder %s160, %s176
      %p178 = scmp.eq.s32.totalorder %s21, 0
      %p179 = por %p177, %p178
      %p180 = scmp.le.s32.totalorder 1, %s15
      %p181 = scmp.lt.s32.totalorder %s15, 3
      %p182 = pnand %p180, %p181
      %p183 = pneg %p182
      // Predicated region
      $region9: #{tpu_custom_call.1} parent=5 // pred_check
        _
      $region10: #{tpu_custom_call.1} parent=5 // pred_check_branch
        %185 = sbr.rel (%p182) target = $region12
      $region11: #{tpu_custom_call.1} parent=5 // pred_region
        %s186 = ssub.s32 %s15, 1
        // Predicated region
        $region13: #{tpu_custom_call.1} parent=11 // pred_check
          %p187 = pneg %p62
        $region14: #{tpu_custom_call.1} parent=11 // pred_check_branch
          %189 = sbr.rel (%p187) target = $region16
        $region15: #{tpu_custom_call.1} parent=11 // pred_region
          _
        $region16: #{tpu_custom_call.1} parent=11 // pred_fallthru
          _
        // Predicated region
        $region17: #{tpu_custom_call.1} parent=11 // pred_check
          %p190 = pneg %p83
        $region18: #{tpu_custom_call.1} parent=11 // pred_check_branch
          %192 = sbr.rel (%p190) target = $region20
        $region19: #{tpu_custom_call.1} parent=11 // pred_region
          _
        $region20: #{tpu_custom_call.1} parent=11 // pred_fallthru
          _
        // Predicated region
        $region21: #{tpu_custom_call.1} parent=11 // pred_check
          %p193 = pneg %p104
        $region22: #{tpu_custom_call.1} parent=11 // pred_check_branch
          %195 = sbr.rel (%p193) target = $region24
        $region23: #{tpu_custom_call.1} parent=11 // pred_region
          _
        $region24: #{tpu_custom_call.1} parent=11 // pred_fallthru
          _
        // Predicated region
        $region25: #{tpu_custom_call.1} parent=11 // pred_check
          %p196 = pneg %p125
        $region26: #{tpu_custom_call.1} parent=11 // pred_check_branch
          %198 = sbr.rel (%p196) target = $region28
        $region27: #{tpu_custom_call.1} parent=11 // pred_region
          _
        $region28: #{tpu_custom_call.1} parent=11 // pred_fallthru
          _
        // Predicated region
        $region29: #{tpu_custom_call.1} parent=11 // pred_check
          %p199 = pneg %p146
        $region30: #{tpu_custom_call.1} parent=11 // pred_check_branch
          %201 = sbr.rel (%p199) target = $region32
        $region31: #{tpu_custom_call.1} parent=11 // pred_region
          _
        $region32: #{tpu_custom_call.1} parent=11 // pred_fallthru
          _
      $region12: #{tpu_custom_call.1} parent=5 // pred_fallthru
        _
      %p202 = scmp.lt.s32.totalorder %s15, 2
      // Predicated region
      $region33: #{tpu_custom_call.1} parent=5 // pred_check
        %p203 = pneg %p202
      $region34: #{tpu_custom_call.1} parent=5 // pred_check_branch
        %205 = sbr.rel (%p203) target = $region36
      $region35: #{tpu_custom_call.1} parent=5 // pred_region
        // Predicated region
        $region37: #{tpu_custom_call.1} parent=35 // pred_check
          %p206 = pneg %p35
        $region38: #{tpu_custom_call.1} parent=35 // pred_check_branch
          %208 = sbr.rel (%p206) target = $region40
        $region39: #{tpu_custom_call.1} parent=35 // pred_region
          %p209 = scmp.lt.s32.totalorder %s15, 1
          %s210 = scalar_select %p209, %s15, 1
          %s211 = smul.addr %s210, 2
          %s212 = smul.addr %s211, 4
          %s213 = scalar_lea.vmem %s0, %s212
        $region40: #{tpu_custom_call.1} parent=35 // pred_fallthru
          _
      $region36: #{tpu_custom_call.1} parent=5 // pred_fallthru
        _
      %p214 = scmp.le.s32.totalorder 1, %s15
      %p215 = scmp.lt.s32.totalorder %s15, 3
      %p216 = pnand %p214, %p215
      %p217 = pneg %p216
      // Predicated region
      $region41: #{tpu_custom_call.1} parent=5 // pred_check
        _
      $region42: #{tpu_custom_call.1} parent=5 // pred_check_branch
        %219 = sbr.rel (%p216) target = $region44
      $region43: #{tpu_custom_call.1} parent=5 // pred_region
        %s220 = ssub.s32 %s15, 1
        %p221 = scmp.lt.s32.totalorder %s20, 1
        %s222 = scalar_select %p221, %s20, 1
        %s223 = smul.addr %s222, 2
        %s224 = smul.addr %s223, 4
        %s225 = scalar_lea.vmem %s0, %s224
        %p226 = pneg %p41
        %p227 = pneg %p38
        %p228 = pneg %p62
        %p229 = pneg %p59
        %p230 = pneg %p83
        %p231 = pneg %p80
        %p232 = pneg %p104
        %p233 = pneg %p101
        %p234 = pneg %p125
        %p235 = pneg %p122
        %p236 = pneg %p146
        %p237 = pneg %p143
        %p238 = pneg %p172
        %p239 = pneg %p169
        %s240 = sand.u32 %s159, 1
        %s241 = scalar_lea.sflag [#allocation3], %s240
        %s242 = sand.u32 %s159, 1
        %s243 = smul.addr %s242, 16
        %s244 = scalar_lea.vmem [#allocation2], %s243
        %p245 = scmp.lt.s32.totalorder %s20, 1
        %s246 = scalar_select %p245, %s20, 1
        %s247 = smul.addr %s246, 2
        %s248 = smul.addr %s247, 4
        %s249 = scalar_lea.vmem %s0, %s248
        %v251 = vld [vmem:[%s249] sm:$0xf]
        %v252 = vld [vmem:[%s249 + $0x4] sm:$0xf]
        %v253 = vld [vmem:[%s1] sm:$0xf]
        %v254 = vld [vmem:[%s1 + $0x4] sm:$0xf]
        %v255 = vld [vmem:[%s1 + $0x8] sm:$0xf]
        %v256 = vld [vmem:[%s1 + $0xc] sm:$0xf]
        %v257 = vld [vmem:[%s1 + $0x10] sm:$0xf]
        %v258 = vld [vmem:[%s1 + $0x14] sm:$0xf]
        %v259 = vld [vmem:[%s3] sm:$0xff]
        %v260 = vld [vmem:[%s3 + $0x8] sm:$0xff]
        %v261 = vld [vmem:[%s3 + $0x10] sm:$0x1]
        %v262 = vld [vmem:[%s2] sm:$0x1]
        %v263 = vadd.f32 %v262, %v259
        %v266 = vunpack.c.l.b16 %v251
        %v267 = vunpack.c.l.b16 %v252
        %v268 = vpack.c.b16 %v267, %v266
        %v275 = vunpack.c.l.b16 %v253
        %v276 = vunpack.c.l.b16 %v254
        %v277 = vunpack.c.l.b16 %v255
        %v278 = vunpack.c.l.b16 %v256
        %v279 = vunpack.c.l.b16 %v257
        %v280 = vunpack.c.l.b16 %v258
        %v281 = vpack.c.b16 %v276, %v275
        %v282 = vpack.c.b16 %v278, %v277
        %v283 = vpack.c.b16 %v280, %v279
        %vm290 = vcmask 1046528
        %v291 = vrot.slane %v259, 1
        %v292 = vrot.slane %v260, 1
        %v293 = vsel %vm290, %v291, %v292
        %v294 = vrot.slane %v261, 1
        %v295 = vsel %vm290, %v292, %v294
        %vm298 = vcmask 392192
        %v300 = vsel %vm298, %v268, 0
        %302 = vmatprep.subr.bf16.mxu0 0
        %303 = vmatpush1.bf16.msra.mxu0 %v281
        %304 = vmatprep.subr.bf16.mxu0 0
        %305 = vmatpush1.bf16.msra.mxu0 %v282
        %306 = vmatprep.subr.bf16.mxu0 0
        %307 = vmatpush1.bf16.msra.mxu0 %v283
        %308 = vmatprep.subr.bf16.mxu0 0
        %309 = vmatpush1.bf16.msra.mxu0 0
        %310 = vmatprep.subr.bf16.mxu0 0
        %311 = vmatpush1.bf16.msra.mxu0 0
        %312 = vmatprep.subr.bf16.mxu0 0
        %313 = vmatpush1.bf16.msra.mxu0 0
        %314 = vmatprep.subr.bf16.mxu0 0
        %315 = vmatpush1.bf16.msra.mxu0 0
        %316 = vmatprep.subr.bf16.mxu0 0
        %317 = vmatpush1.bf16.msra.mxu0 0
        %318 = vmatprep.subr.bf16.mxu0 0
        %319 = vmatpush1.bf16.msra.mxu0 0
        %320 = vmatprep.subr.bf16.mxu0 0
        %321 = vmatpush1.bf16.msra.mxu0 0
        %322 = vmatprep.subr.bf16.mxu0 0
        %323 = vmatpush1.bf16.msra.mxu0 0
        %324 = vmatprep.subr.bf16.mxu0 0
        %325 = vmatpush1.bf16.msra.mxu0 0
        %326 = vmatprep.subr.bf16.mxu0 0
        %327 = vmatpush1.bf16.msra.mxu0 0
        %328 = vmatprep.subr.bf16.mxu0 0
        %329 = vmatpush1.bf16.msra.mxu0 0
        %330 = vmatprep.subr.bf16.mxu0 0
        %331 = vmatpush1.bf16.msra.mxu0 0
        %332 = vmatprep.subr.bf16.mxu0 0
        %333 = vmatpush1.bf16.msra.mxu0 0
        %334 = vmatprep.mubr.bf16.mxu0 0
        %335 = vmatmul.mubr.bf16.gmra.mrb[0].mxu0 %v300
        %v336 = vpop.f32.mrb[0].mxu0
        %v337 = vadd.f32 %v293, %v336
        %v338 = vpop.f32.mrb[0].mxu0
        %v339 = vpop.f32.mrb[0].mxu0
        %v340 = vadd.f32 %v295, %v339
        %v341 = vpop.f32.mrb[0].mxu0
        %342 = vdwg.mxu0
        %vm345 = vcmask 1040384
        %v346 = vrot.slane %v337, 7
        %v347 = vrot.slane %v340, 7
        %v348 = vsel %vm345, %v346, %v347
        %v352 = vsel %vm345, %v263, %v346
        %v353 = vld [vmem:[%s4] sm:$0x1]
        %v354 = vld [vmem:[%s5] sm:$0x1]
        %vm355 = vcmask 261120
        %v356 = vsel %vm355, %v352, 0.0
        %357 = vadd.xlane.f32.xlu0 %v356
        %v358 = vpop.xlane.xlu0 %357
        %v359 = vsel %vm355, %v348, 0.0
        %360 = vadd.xlane.f32.xlu0 %v359
        %v361 = vpop.xlane.xlu0 %360
        %vm362 = vcmask 253952
        %v363 = vsel %vm362, %v347, 0.0
        %364 = vadd.xlane.f32.xlu0 %v363
        %v365 = vpop.xlane.xlu0 %364
        %v366 = vrcp.pop 32.0
        %v367 = vmul.f32 %v358, %v366
        %v368 = vmul.f32 %v361, %v366
        %v369 = vmul.f32 %v365, %v366
        %v370 = vsub.f32 %v352, %v367
        %v371 = vsub.f32 %v348, %v368
        %v372 = vsub.f32 %v347, %v369
        %v373 = vmul.f32 %v370, %v370
        %v374 = vmul.f32 %v371, %v371
        %v375 = vmul.f32 %v372, %v372
        %v376 = vsel %vm355, %v373, 0.0
        %377 = vadd.xlane.f32.xlu0 %v376
        %v378 = vpop.xlane.xlu0 %377
        %v379 = vsel %vm355, %v374, 0.0
        %380 = vadd.xlane.f32.xlu0 %v379
        %v381 = vpop.xlane.xlu0 %380
        %v382 = vsel %vm362, %v375, 0.0
        %383 = vadd.xlane.f32.xlu0 %v382
        %v384 = vpop.xlane.xlu0 %383
        %v385 = vmul.f32 %v378, %v366
        %v386 = vmul.f32 %v381, %v366
        %v387 = vmul.f32 %v384, %v366
        %v388 = vadd.f32 %v385, 1e-05
        %v389 = vadd.f32 %v386, 1e-05
        %v390 = vadd.f32 %v387, 1e-05
        %v391 = vrsqrt.pop %v388
        %v392 = vrsqrt.pop %v389
        %v393 = vrsqrt.pop %v390
        %v394 = vmul.f32 %v370, %v391
        %v395 = vmul.f32 %v371, %v392
        %v396 = vmul.f32 %v372, %v393
        %v398 = vlaneseq
        %v399 = vshrl.u32 %v398, 7
        %v400 = vsub.s32 0, %v399
        %v401 = vrot.slane %v353, %v400
        %v403 = vmul.f32 %v394, %v401
        %v404 = vmul.f32 %v395, %v401
        %v405 = vmul.f32 %v396, %v401
        %v407 = vlaneseq
        %v408 = vshrl.u32 %v407, 7
        %v409 = vsub.s32 0, %v408
        %v410 = vrot.slane %v354, %v409
        %v412 = vadd.f32 %v403, %v410
        %v413 = vadd.f32 %v404, %v410
        %v414 = vadd.f32 %v405, %v410
        %v415 = vsel %vm345, %v414, 0.0
        %v416 = vpack.c.bf16 %v413, %v412
        %v417 = vpack.c.bf16 0.0, %v415
        %v420 = vunpack.c.l.b16 %v416
        %v421 = vunpack.c.h.b16 %v416
        %v422 = vunpack.c.l.b16 %v417
        %v423 = vunpack.c.h.b16 %v417
        %v424 = vpack.c.b16 %v420, %v420
        %v425 = vpack.c.b16 %v421, %v421
        %v426 = vpack.c.b16 %v422, %v422
        %v427 = vpack.c.b16 %v423, %v423
        %vm432 = vcmask 257024
        %433 = vst.msk [vmem:[%s244] sm:$0xf] %vm432, %v424
        %434 = vst.msk [vmem:[%s244 + $0x4] sm:$0xf] %vm432, %v425
        %435 = vst.msk [vmem:[%s244 + $0x8] sm:$0xf] %vm432, %v426
        %436 = vst.msk [vmem:[%s244 + $0xc] sm:$0xf] %vm432, %v427
        %s437 = sand.u32 %s159, 1
        %s438 = scalar_lea.sflag [#allocation3], %s437
        %s439 = sand.u32 %s159, 1
        %s440 = smul.addr %s439, 16
        %s441 = scalar_lea.vmem [#allocation2], %s440
        // Predicated region
        $region45: #{tpu_custom_call.1} parent=43 // pred_check
          %p442 = pneg %p169
        $region46: #{tpu_custom_call.1} parent=43 // pred_check_branch
          %444 = sbr.rel (%p442) target = $region48
        $region47: #{tpu_custom_call.1} parent=43 // pred_region
          %s446 = ssub.s32 256, 256
          %447 = vsyncadd %s438, %s446
          %s448 = smul.addr %s20, 4
          %s449 = smul.addr %s448, 64
          %s450 = scalar_lea.hbm %s6, %s449
          %s451 = sshll.u32 %s441, 4
          %s452 = int_to_ptr.vmem [resolvable:$true] %s451
          %457 = dma.vmem_to_hbm [thread:$0]  %s452, 256, %s450, %s438, 64, 64, 4
        $region48: #{tpu_custom_call.1} parent=43 // pred_fallthru
          _
      $region44: #{tpu_custom_call.1} parent=5 // pred_fallthru
        _
      %p458 = scmp.le.s32.totalorder 2, %s15
      // Predicated region
      $region49: #{tpu_custom_call.1} parent=5 // pred_check
        %p459 = pneg %p458
      $region50: #{tpu_custom_call.1} parent=5 // pred_check_branch
        %461 = sbr.rel (%p459) target = $region52
      $region51: #{tpu_custom_call.1} parent=5 // pred_region
        %s462 = ssub.s32 %s15, 2
        // Predicated region
        $region53: #{tpu_custom_call.1} parent=51 // pred_check
          %p463 = pneg %p175
        $region54: #{tpu_custom_call.1} parent=51 // pred_check_branch
          %465 = sbr.rel (%p463) target = $region56
        $region55: #{tpu_custom_call.1} parent=51 // pred_region
          %s466 = sand.u32 %s160, 1
          %s467 = scalar_lea.sflag [#allocation3], %s466
          %s468 = sand.u32 %s160, 1
          %s469 = smul.addr %s468, 16
          %s470 = scalar_lea.vmem [#allocation2], %s469
          %471 = dma.done %s467, 256
        $region56: #{tpu_custom_call.1} parent=51 // pred_fallthru
          _
      $region52: #{tpu_custom_call.1} parent=5 // pred_fallthru
        _
    $region6: #{tpu_custom_call.1} parent=1 // loop_footer
      %s19 = sadd.s32 1, %s15
    $region7: #{tpu_custom_call.1} parent=1 // loop_footer_branch
      %14 = sbr.rel target = $region3
    $region8: #{tpu_custom_call.1} parent=1 // loop_exit
      _
    %472 = vsyncpa [#allocation3], 1
    %s473 = scalar_lea.sflag [#allocation3], 1
    %474 = vsyncpa %s473, 1

</llo_original>
